<compile_context>
chip_gen: v5e
topology: v5e:2x2
jax: 0.10.0
libtpu: 0.0.40
codegen_flags: <defaults>
</compile_context>

<pallas_src>
import math

import jax
import jax.numpy as jnp
from jax.experimental import pallas as pl
from jax.experimental.pallas import tpu as pltpu

_LANE = 128
_SUB = 8


def _round_up(n, m):
    return ((n + m - 1) // m) * m


def _pad_to(a, shape):
    pads = [(0, t - s) for s, t in zip(a.shape, shape)]
    if any(p for _, p in pads):
        a = jnp.pad(a, pads)
    return a


def _vmem_capacity_bytes():
    """Generation-aware VMEM size; conservative 64 MiB fallback (fits v7x)."""
    try:
        return int(pltpu.get_tpu_info().vmem_capacity_bytes)
    except Exception:
        return 64 * 1024 * 1024


# --------------------------------------------------------------------------- #
# Kernel: one (TB, D0p) batch tile of the two-layer MLP.
#   x_ref : (TB, D0p)  input dtype (cast to bf16 in-kernel)
#   w1_ref: (D0p, D1p) bf16     b1_ref: (1, D1p) f32
#   w2_ref: (D1p, D2p) bf16     b2_ref: (1, D2p) f32
#   o_ref : (TB, D2p)  output dtype (== input dtype)
# --------------------------------------------------------------------------- #
def _mlp_kernel(x_ref, w1_ref, b1_ref, w2_ref, b2_ref, o_ref):
    # In-kernel cast (perf review #1): x arrives in its HBM dtype, so the
    # wrapper never re-writes it; the cast is VALU work hidden under the DMA.
    x = x_ref[...].astype(w1_ref.dtype)
    # Layer 1: MXU matmul with f32 accumulation, bias + ReLU on the f32 acc.
    h = jnp.dot(x, w1_ref[...], preferred_element_type=jnp.float32)
    h = jnp.maximum(h + b1_ref[...], 0.0)
    # Layer 2: bf16 MXU feed, f32 accumulation, bias + Tanh (EUP) epilogue.
    y = jnp.dot(h.astype(w2_ref.dtype), w2_ref[...],
                preferred_element_type=jnp.float32)
    # NOTE(v7x): if profiling shows the single EUP slot saturating after the
    # DMA fixes, compute tanh on (y + b2) cast to bf16 for the packed EUP path.
    o_ref[...] = jnp.tanh(y + b2_ref[...]).astype(o_ref.dtype)


# --------------------------------------------------------------------------- #
# One-time parameter preparation (hoisted out of the per-call path).
# Weights are stored pre-transposed as (in, out); kernel computes y = x @ W + b.
# compute_dtype=jnp.float32 is the full-precision escape hatch (MXU still f32).
# --------------------------------------------------------------------------- #
def prepare_mlp_params(w1, b1, w2, b2, *, compute_dtype=jnp.bfloat16):
    D0, D1 = w1.shape
    D1b, D2 = w2.shape
    assert D1b == D1, "w2 fan-in must match hidden dim"
    assert D2 == D0, "SimpleMLPreshape requires output dim == flattened input dim"
    D0p = _round_up(D0, _LANE)
    D1p = _round_up(D1, _LANE)
    D2p = _round_up(D2, _LANE)
    cdt = jnp.dtype(compute_dtype)
    w1p = _pad_to(w1, (D0p, D1p)).astype(cdt)
    w2p = _pad_to(w2, (D1p, D2p)).astype(cdt)
    b1p = _pad_to(b1.reshape(1, -1).astype(jnp.float32), (1, D1p))
    b2p = _pad_to(b2.reshape(1, -1).astype(jnp.float32), (1, D2p))
    return w1p, b1p, w2p, b2p


# --------------------------------------------------------------------------- #
# Forward pass (jit-friendly: all branching is on static shapes).
# --------------------------------------------------------------------------- #
def simple_mlp_reshape(x, w1p, b1p, w2p, b2p):
    orig_shape = x.shape
    B = orig_shape[0]
    D0 = math.prod(orig_shape[1:])
    D2 = D0                                    # module constraint (reshape back)

    D0p, D1p = w1p.shape
    D2p = w2p.shape[1]
    assert D0p == _round_up(D0, _LANE), "prepared params do not match x's flattened dim"

    odt = jnp.dtype(x.dtype)
    cdt = jnp.dtype(w1p.dtype)

    xf = x.reshape(B, D0)                      # == torch .view(B, -1) (row-major)

    # Feature padding only when D0 is not lane-aligned (zero cols are inert).
    if D0p != D0:
        xf = jnp.pad(xf, ((0, 0), (0, D0p - D0)))

    # --- generation-aware VMEM budgeting ------------------------------------
    vmem_cap = _vmem_capacity_bytes()
    budget = int(vmem_cap * 0.75)
    w_bytes = (D0p * D1p + D1p * D2p) * cdt.itemsize + (D1p + D2p) * 4
    resident = 2 * w_bytes                     # Pallas double-buffers EVERY input spec
    # Per-row cost: double-buffered x tile + out tile (in their HBM dtypes),
    # plus in-kernel temporaries (bf16 x copy, f32 h, bf16 h copy, f32 y).
    per_row = (2 * D0p * odt.itemsize + 2 * D2p * odt.itemsize
               + D0p * cdt.itemsize + D1p * (4 + cdt.itemsize) + D2p * 4)

    # TODO(synk): if the resident (double-buffered) weights alone ever exceed
    # the budget (very large D0/D2), split K with an "arbitrary" reduction grid
    # axis and an f32 VMEM accumulator; not needed at these sizes.
    tb_cap = (budget - resident) // per_row
    tb_cap = max(_SUB, (tb_cap // _SUB) * _SUB)
    TB = min(1024, tb_cap)
    # v7x megacore: give both TensorCores grid steps for medium/large batches.
    if B >= 16:
        TB = min(TB, max(_SUB, (B // 2) // _SUB * _SUB))

    if TB >= B:
        # Whole batch in one block: block dim equals the full array dim, so no
        # batch padding is needed at all (even when B is not a multiple of 8).
        TB = B
        B_out = B
    else:
        B_out = _round_up(B, TB)
        if B_out != B:
            xf = jnp.pad(xf, ((0, B_out - B), (0, 0)))
    n_steps = B_out // TB

    # --- advisory cost estimate ---------------------------------------------
    flops = 2 * B_out * D1p * (D0p + D2p)
    transcendentals = B_out * D2p
    bytes_accessed = (B_out * D0p * odt.itemsize          # x read
                      + w_bytes                           # weights/biases read
                      + B_out * D2p * odt.itemsize)       # output write

    vmem_limit = int(min(vmem_cap * 0.85,
                         max(32 * 1024 * 1024,
                             resident + 2 * TB * per_row + (8 << 20))))

    out = pl.pallas_call(
        _mlp_kernel,
        out_shape=jax.ShapeDtypeStruct((B_out, D2p), odt),
        grid=(n_steps,),
        in_specs=[
            pl.BlockSpec((TB, D0p), lambda i: (i, 0)),     # x tile (pipelined)
            pl.BlockSpec((D0p, D1p), lambda i: (0, 0)),    # w1 (VMEM-resident)
            pl.BlockSpec((1, D1p), lambda i: (0, 0)),      # b1
            pl.BlockSpec((D1p, D2p), lambda i: (0, 0)),    # w2 (VMEM-resident)
            pl.BlockSpec((1, D2p), lambda i: (0, 0)),      # b2
        ],
        out_specs=pl.BlockSpec((TB, D2p), lambda i: (i, 0)),
        compiler_params=pltpu.CompilerParams(
            dimension_semantics=("parallel",),
            vmem_limit_bytes=vmem_limit,
        ),
        cost_estimate=pl.CostEstimate(
            flops=flops,
            transcendentals=transcendentals,
            bytes_accessed=bytes_accessed,
        ),
    )(xf, w1p, b1p, w2p, b2p)

    if B_out != B or D2p != D2:
        out = out[:B, :D2]
    return out.reshape(orig_shape)


# --------------------------------------------------------------------------- #
# Reference + init helpers
# --------------------------------------------------------------------------- #
def init_linear_params(key, fan_in, fan_out, dtype=jnp.float32):
    """nn.Linear default init U(-1/sqrt(in), 1/sqrt(in)); weight stored as (in, out)."""
    kw, kb = jax.random.split(key)
    bound = 1.0 / math.sqrt(fan_in)
    w = jax.random.uniform(kw, (fan_in, fan_out), dtype, -bound, bound)
    b = jax.random.uniform(kb, (fan_out,), dtype, -bound, bound)
    return w, b


def reference_forward(x, w1, b1, w2, b2):
    shape = x.shape
    xf = x.reshape(shape[0], -1)
    h = jnp.maximum(xf @ w1 + b1, 0.0)          # Linear + ReLU
    y = jnp.tanh(h @ w2 + b2)                   # Linear + Tanh (default last activation)
    return y.reshape(shape)


if __name__ == "__main__":
    # Small shapes consistent with the module: x in NCHW, flattened dim = C*H*W.
    B, C, H, W = 2, 4, 16, 16
    D0 = C * H * W                              # 1024
    D1 = 32                                     # hidden
    dimsList = [D0, D1, D0]                     # SimpleMLPreshape needs D_out == D_in

    key = jax.random.PRNGKey(0)
    kx, k1, k2 = jax.random.split(key, 3)

    x = jax.random.normal(kx, (B, C, H, W), jnp.float32)
    w1, b1 = init_linear_params(k1, dimsList[0], dimsList[1])
    w2, b2 = init_linear_params(k2, dimsList[1], dimsList[2])

    # Weight prep hoisted out of the per-call path (done once).
    params = prepare_mlp_params(w1, b1, w2, b2)
    forward = jax.jit(simple_mlp_reshape)

    out = jax.block_until_ready(forward(x, *params))
    ref = reference_forward(x, w1, b1, w2, b2)

    assert out.shape == x.shape and out.dtype == x.dtype
    max_err = float(jnp.max(jnp.abs(out - ref)))
    # bf16 MXU feed with f32 accumulation vs f32 reference: loosened tolerance.
    assert jnp.allclose(out, ref, atol=3e-2, rtol=0.0), f"mismatch (max err {max_err})"

    print("KERNEL_OK")
</pallas_src>

<mosaic_0001>
module attributes {stable_mosaic.version = 11 : i64} {
  func.func @_mlp_kernel(%arg0: i32, %arg1: memref<2x1024xf32, #tpu.memory_space<vmem>>, %arg2: memref<1024x128xbf16, #tpu.memory_space<vmem>>, %arg3: memref<1x128xf32, #tpu.memory_space<vmem>>, %arg4: memref<128x1024xbf16, #tpu.memory_space<vmem>>, %arg5: memref<1x1024xf32, #tpu.memory_space<vmem>>, %arg6: memref<2x1024xf32, #tpu.memory_space<vmem>>) attributes {dimension_semantics = [#tpu.dimension_semantics<parallel>], iteration_bounds = array<i64: 1>, scalar_prefetch = 0 : i64, scratch_operands = 0 : i64, tpu.core_type = #tpu.core_type<tc>, window_params = [{transform_indices = @transform_0, window_bounds = array<i64: 2, 1024>}, {pipeline_mode = #tpu.pipeline_mode<synchronous>, transform_indices = @transform_1, window_bounds = array<i64: 1024, 128>}, {pipeline_mode = #tpu.pipeline_mode<synchronous>, transform_indices = @transform_2, window_bounds = array<i64: 1, 128>}, {pipeline_mode = #tpu.pipeline_mode<synchronous>, transform_indices = @transform_3, window_bounds = array<i64: 128, 1024>}, {pipeline_mode = #tpu.pipeline_mode<synchronous>, transform_indices = @transform_4, window_bounds = array<i64: 1, 1024>}, {transform_indices = @transform_5, window_bounds = array<i64: 2, 1024>}]} {
    %c0 = arith.constant 0 : index
    %c0_0 = arith.constant 0 : index
    %0 = vector.load %arg1[%c0, %c0_0] : memref<2x1024xf32, #tpu.memory_space<vmem>>, vector<2x1024xf32>
    %1 = arith.truncf %0 : vector<2x1024xf32> to vector<2x1024xbf16>
    %c0_1 = arith.constant 0 : index
    %c0_2 = arith.constant 0 : index
    %2 = vector.load %arg2[%c0_1, %c0_2] : memref<1024x128xbf16, #tpu.memory_space<vmem>>, vector<1024x128xbf16>
    %cst = arith.constant dense<0.000000e+00> : vector<2x128xf32>
    %3 = tpu.matmul %1, %2, %cst {dimension_numbers = #tpu.dot_dimension_numbers<[1], [0], [0], [1], [0, 0, 1, 1], [], []>} : vector<2x1024xbf16>, vector<1024x128xbf16>, vector<2x128xf32> -> vector<2x128xf32>
    %c0_3 = arith.constant 0 : index
    %c0_4 = arith.constant 0 : index
    %4 = vector.load %arg3[%c0_3, %c0_4] : memref<1x128xf32, #tpu.memory_space<vmem>>, vector<1x128xf32>
    %5 = vector.broadcast %4 : vector<1x128xf32> to vector<2x128xf32>
    %6 = arith.addf %3, %5 : vector<2x128xf32>
    %cst_5 = arith.constant 0.000000e+00 : f32
    %7 = vector.broadcast %cst_5 : f32 to vector<2x128xf32>
    %8 = arith.maximumf %6, %7 : vector<2x128xf32>
    %9 = arith.truncf %8 : vector<2x128xf32> to vector<2x128xbf16>
    %c0_6 = arith.constant 0 : index
    %c0_7 = arith.constant 0 : index
    %10 = vector.load %arg4[%c0_6, %c0_7] : memref<128x1024xbf16, #tpu.memory_space<vmem>>, vector<128x1024xbf16>
    %cst_8 = arith.constant dense<0.000000e+00> : vector<2x1024xf32>
    %11 = tpu.matmul %9, %10, %cst_8 {dimension_numbers = #tpu.dot_dimension_numbers<[1], [0], [0], [1], [0, 0, 1, 1], [], []>} : vector<2x128xbf16>, vector<128x1024xbf16>, vector<2x1024xf32> -> vector<2x1024xf32>
    %c0_9 = arith.constant 0 : index
    %c0_10 = arith.constant 0 : index
    %12 = vector.load %arg5[%c0_9, %c0_10] : memref<1x1024xf32, #tpu.memory_space<vmem>>, vector<1x1024xf32>
    %13 = vector.broadcast %12 : vector<1x1024xf32> to vector<2x1024xf32>
    %14 = arith.addf %11, %13 : vector<2x1024xf32>
    %15 = math.tanh %14 : vector<2x1024xf32>
    %c0_11 = arith.constant 0 : index
    %c0_12 = arith.constant 0 : index
    %16 = vector.load %arg6[%c0_11, %c0_12] : memref<2x1024xf32, #tpu.memory_space<vmem>>, vector<2x1024xf32>
    tpu.vector_store %arg6[%c0_11, %c0_12], %15 {strides = array<i32>} : memref<2x1024xf32, #tpu.memory_space<vmem>>, vector<2x1024xf32>,
    return
  }
  func.func @transform_0(%arg0: i32) -> (i32, i32) {
    %c0_i32 = arith.constant 0 : i32
    %c0_i32_0 = arith.constant 0 : i32
    return %arg0, %c0_i32 : i32, i32
  }
  func.func @transform_1(%arg0: i32) -> (i32, i32) {
    %c0_i32 = arith.constant 0 : i32
    %c0_i32_0 = arith.constant 0 : i32
    %c0_i32_1 = arith.constant 0 : i32
    return %c0_i32, %c0_i32_0 : i32, i32
  }
  func.func @transform_2(%arg0: i32) -> (i32, i32) {
    %c0_i32 = arith.constant 0 : i32
    %c0_i32_0 = arith.constant 0 : i32
    %c0_i32_1 = arith.constant 0 : i32
    return %c0_i32, %c0_i32_0 : i32, i32
  }
  func.func @transform_3(%arg0: i32) -> (i32, i32) {
    %c0_i32 = arith.constant 0 : i32
    %c0_i32_0 = arith.constant 0 : i32
    %c0_i32_1 = arith.constant 0 : i32
    return %c0_i32, %c0_i32_0 : i32, i32
  }
  func.func @transform_4(%arg0: i32) -> (i32, i32) {
    %c0_i32 = arith.constant 0 : i32
    %c0_i32_0 = arith.constant 0 : i32
    %c0_i32_1 = arith.constant 0 : i32
    return %c0_i32, %c0_i32_0 : i32, i32
  }
  func.func @transform_5(%arg0: i32) -> (i32, i32) {
    %c0_i32 = arith.constant 0 : i32
    %c0_i32_0 = arith.constant 0 : i32
    return %arg0, %c0_i32 : i32, i32
  }
}

</mosaic_0001>

<llo_original>
// kernel: simple_mlp_reshape.1
$region0: #{simple_mlp_reshape.1}
  #allocation0 [shape = 'u32[]', space=smem, size = 0x4, offset = 0x4, fixed_abs, tag = 'smem constant byte address 0x4 - core index']
  #allocation1 [shape = 'u32[72,128]{1,0:T(1,128)}', space=vmem, size = 0x9000, scoped, tag = 'internal scratch']
  %s0 = inlined_call_operand.vmem [shape: f32[2,1024], index: 0, kind: input, shape index: {}]
  %s1 = inlined_call_operand.hbm [shape: bf16[1024,128], index: 1, kind: input, shape index: {}]
  %s2 = inlined_call_operand.vmem [shape: f32[1,128], index: 2, kind: input, shape index: {}]
  %s3 = inlined_call_operand.hbm [shape: bf16[128,1024], index: 3, kind: input, shape index: {}]
  %s4 = inlined_call_operand.vmem [shape: f32[1,1024], index: 4, kind: input, shape index: {}]
  %s5 = inlined_call_operand.vmem [shape: f32[2,1024], index: 5, kind: output, shape index: {}]
  %s6 = sld [smem:[#allocation0]]
  $region38: #{simple_mlp_reshape.1} parent=0
    _
  %s8 = ssub.s32 1, %s6
  %s9 = scalar_select 0, %s8, %s6
  $region1: #{simple_mlp_reshape.1} parent=0
    #allocation2 [shape = 'u8[262144]{0}', space=vmem, size = 0x40000, scoped, tag = 'input window, operand 1, single buffered']
    #allocation3 [shape = 's32[1]{0}', space=sflag, size = 0x4, scoped, tag = 'scoped memory for simple_mlp_reshape.1']
    #allocation4 [shape = 'u8[262144]{0}', space=vmem, size = 0x40000, scoped, tag = 'input window, operand 3, single buffered']
    #allocation5 [shape = 's32[1]{0}', space=sflag, size = 0x4, scoped, tag = 'scoped memory for simple_mlp_reshape.1']
    %10 = vsyncpa [#allocation3], 0
    %11 = vsyncpa [#allocation5], 0
    // Predicated region
    $region2: #{simple_mlp_reshape.1} parent=1 // pred_check
      _
    $region3: #{simple_mlp_reshape.1} parent=1 // pred_check_branch
      %13 = sbr.rel (0) target = $region5
    $region4: #{simple_mlp_reshape.1} parent=1 // pred_region
      _
    $region5: #{simple_mlp_reshape.1} parent=1 // pred_fallthru
      _
    // Predicated region
    $region6: #{simple_mlp_reshape.1} parent=1 // pred_check
      _
    $region7: #{simple_mlp_reshape.1} parent=1 // pred_check_branch
      %15 = sbr.rel (0) target = $region9
    $region8: #{simple_mlp_reshape.1} parent=1 // pred_region
      %17 = vsyncadd [#allocation3], 0
      %s18 = sshll.u32 %s1, 4
      %s19 = int_to_ptr.hbm [resolvable:$true] %s18
      %s20 = sshll.u32 [#allocation2], 4
      %s21 = int_to_ptr.vmem [resolvable:$true] %s20
      %26 = dma.hbm_to_vmem [thread:$0]  %s19, 8192, %s21, [#allocation3], 64, 64, 4
    $region9: #{simple_mlp_reshape.1} parent=1 // pred_fallthru
      _
    // Predicated region
    $region10: #{simple_mlp_reshape.1} parent=1 // pred_check
      _
    $region11: #{simple_mlp_reshape.1} parent=1 // pred_check_branch
      %28 = sbr.rel (0) target = $region13
    $region12: #{simple_mlp_reshape.1} parent=1 // pred_region
      _
    $region13: #{simple_mlp_reshape.1} parent=1 // pred_fallthru
      _
    // Predicated region
    $region14: #{simple_mlp_reshape.1} parent=1 // pred_check
      _
    $region15: #{simple_mlp_reshape.1} parent=1 // pred_check_branch
      %30 = sbr.rel (0) target = $region17
    $region16: #{simple_mlp_reshape.1} parent=1 // pred_region
      %32 = vsyncadd [#allocation5], 0
      %s33 = sshll.u32 %s3, 4
      %s34 = int_to_ptr.hbm [resolvable:$true] %s33
      %s35 = sshll.u32 [#allocation4], 4
      %s36 = int_to_ptr.vmem [resolvable:$true] %s35
      %41 = dma.hbm_to_vmem [thread:$0]  %s34, 8192, %s36, [#allocation5], 512, 512, 32
    $region17: #{simple_mlp_reshape.1} parent=1 // pred_fallthru
      _
    // Predicated region
    $region18: #{simple_mlp_reshape.1} parent=1 // pred_check
      _
    $region19: #{simple_mlp_reshape.1} parent=1 // pred_check_branch
      %43 = sbr.rel (0) target = $region21
    $region20: #{simple_mlp_reshape.1} parent=1 // pred_region
      _
    $region21: #{simple_mlp_reshape.1} parent=1 // pred_fallthru
      _
    // Predicated region
    $region22: #{simple_mlp_reshape.1} parent=1 // pred_check
      _
    $region23: #{simple_mlp_reshape.1} parent=1 // pred_check_branch
      %45 = sbr.rel (0) target = $region25
    $region24: #{simple_mlp_reshape.1} parent=1 // pred_region
      %47 = dma.done [#allocation3], 8192
    $region25: #{simple_mlp_reshape.1} parent=1 // pred_fallthru
      _
    // Predicated region
    $region26: #{simple_mlp_reshape.1} parent=1 // pred_check
      _
    $region27: #{simple_mlp_reshape.1} parent=1 // pred_check_branch
      %49 = sbr.rel (0) target = $region29
    $region28: #{simple_mlp_reshape.1} parent=1 // pred_region
      %51 = dma.done [#allocation5], 8192
    $region29: #{simple_mlp_reshape.1} parent=1 // pred_fallthru
      _
    %v52 = vld [vmem:[%s0] sm:$0xff]
    %v53 = vld [vmem:[%s0 + $0x8] sm:$0xff]
    %56 = vst [vmem:[#allocation1] ss:$4 sm:$0xff] %v52
    %s57 = scalar_lea.vmem [#allocation1], 32
    %58 = vst [vmem:[%s57] ss:$4 sm:$0xff] %v53
    %v59 = vld.sshfl [vmem:[#allocation1] sm:$0xff pattern:$0x73625140]
    %v60 = vld.sshfl [vmem:[#allocation1 + $0x8] sm:$0xff pattern:$0x73625140]
    %v61 = vld.sshfl [vmem:[#allocation1 + $0x10] sm:$0xff pattern:$0x73625140]
    %v62 = vld.sshfl [vmem:[#allocation1 + $0x18] sm:$0xff pattern:$0x73625140]
    %v63 = vld.sshfl [vmem:[#allocation1 + $0x20] sm:$0xff pattern:$0x73625140]
    %v64 = vld.sshfl [vmem:[#allocation1 + $0x28] sm:$0xff pattern:$0x73625140]
    %v65 = vld.sshfl [vmem:[#allocation1 + $0x30] sm:$0xff pattern:$0x73625140]
    %v66 = vld.sshfl [vmem:[#allocation1 + $0x38] sm:$0xff pattern:$0x73625140]
    %v75 = vpack.c.bf16 %v59, %v59
    %v76 = vpack.c.bf16 %v60, %v60
    %v77 = vpack.c.bf16 %v61, %v61
    %v78 = vpack.c.bf16 %v62, %v62
    %v79 = vpack.c.bf16 %v63, %v63
    %v80 = vpack.c.bf16 %v64, %v64
    %v81 = vpack.c.bf16 %v65, %v65
    %v82 = vpack.c.bf16 %v66, %v66
    %v83 = vld [vmem:[#allocation2] sm:$0xf]
    %v84 = vld [vmem:[#allocation2 + $0x4] sm:$0xf]
    %v85 = vld [vmem:[#allocation2 + $0x8] sm:$0xf]
    %v86 = vld [vmem:[#allocation2 + $0xc] sm:$0xf]
    %v87 = vld [vmem:[#allocation2 + $0x10] sm:$0xf]
    %v88 = vld [vmem:[#allocation2 + $0x14] sm:$0xf]
    %v89 = vld [vmem:[#allocation2 + $0x18] sm:$0xf]
    %v90 = vld [vmem:[#allocation2 + $0x1c] sm:$0xf]
    %v91 = vld [vmem:[#allocation2 + $0x20] sm:$0xf]
    %v92 = vld [vmem:[#allocation2 + $0x24] sm:$0xf]
    %v93 = vld [vmem:[#allocation2 + $0x28] sm:$0xf]
    %v94 = vld [vmem:[#allocation2 + $0x2c] sm:$0xf]
    %v95 = vld [vmem:[#allocation2 + $0x30] sm:$0xf]
    %v96 = vld [vmem:[#allocation2 + $0x34] sm:$0xf]
    %v97 = vld [vmem:[#allocation2 + $0x38] sm:$0xf]
    %v98 = vld [vmem:[#allocation2 + $0x3c] sm:$0xf]
    %v99 = vld [vmem:[#allocation2 + $0x40] sm:$0xf]
    %v100 = vld [vmem:[#allocation2 + $0x44] sm:$0xf]
    %v101 = vld [vmem:[#allocation2 + $0x48] sm:$0xf]
    %v102 = vld [vmem:[#allocation2 + $0x4c] sm:$0xf]
    %v103 = vld [vmem:[#allocation2 + $0x50] sm:$0xf]
    %v104 = vld [vmem:[#allocation2 + $0x54] sm:$0xf]
    %v105 = vld [vmem:[#allocation2 + $0x58] sm:$0xf]
    %v106 = vld [vmem:[#allocation2 + $0x5c] sm:$0xf]
    %v107 = vld [vmem:[#allocation2 + $0x60] sm:$0xf]
    %v108 = vld [vmem:[#allocation2 + $0x64] sm:$0xf]
    %v109 = vld [vmem:[#allocation2 + $0x68] sm:$0xf]
    %v110 = vld [vmem:[#allocation2 + $0x6c] sm:$0xf]
    %v111 = vld [vmem:[#allocation2 + $0x70] sm:$0xf]
    %v112 = vld [vmem:[#allocation2 + $0x74] sm:$0xf]
    %v113 = vld [vmem:[#allocation2 + $0x78] sm:$0xf]
    %v114 = vld [vmem:[#allocation2 + $0x7c] sm:$0xf]
    %v115 = vld [vmem:[#allocation2 + $0x80] sm:$0xf]
    %v116 = vld [vmem:[#allocation2 + $0x84] sm:$0xf]
    %v117 = vld [vmem:[#allocation2 + $0x88] sm:$0xf]
    %v118 = vld [vmem:[#allocation2 + $0x8c] sm:$0xf]
    %v119 = vld [vmem:[#allocation2 + $0x90] sm:$0xf]
    %v120 = vld [vmem:[#allocation2 + $0x94] sm:$0xf]
    %v121 = vld [vmem:[#allocation2 + $0x98] sm:$0xf]
    %v122 = vld [vmem:[#allocation2 + $0x9c] sm:$0xf]
    %v123 = vld [vmem:[#allocation2 + $0xa0] sm:$0xf]
    %v124 = vld [vmem:[#allocation2 + $0xa4] sm:$0xf]
    %v125 = vld [vmem:[#allocation2 + $0xa8] sm:$0xf]
    %v126 = vld [vmem:[#allocation2 + $0xac] sm:$0xf]
    %v127 = vld [vmem:[#allocation2 + $0xb0] sm:$0xf]
    %v128 = vld [vmem:[#allocation2 + $0xb4] sm:$0xf]
    %v129 = vld [vmem:[#allocation2 + $0xb8] sm:$0xf]
    %v130 = vld [vmem:[#allocation2 + $0xbc] sm:$0xf]
    %v131 = vld [vmem:[#allocation2 + $0xc0] sm:$0xf]
    %v132 = vld [vmem:[#allocation2 + $0xc4] sm:$0xf]
    %v133 = vld [vmem:[#allocation2 + $0xc8] sm:$0xf]
    %v134 = vld [vmem:[#allocation2 + $0xcc] sm:$0xf]
    %v135 = vld [vmem:[#allocation2 + $0xd0] sm:$0xf]
    %v136 = vld [vmem:[#allocation2 + $0xd4] sm:$0xf]
    %v137 = vld [vmem:[#allocation2 + $0xd8] sm:$0xf]
    %v138 = vld [vmem:[#allocation2 + $0xdc] sm:$0xf]
    %v139 = vld [vmem:[#allocation2 + $0xe0] sm:$0xf]
    %v140 = vld [vmem:[#allocation2 + $0xe4] sm:$0xf]
    %v141 = vld [vmem:[#allocation2 + $0xe8] sm:$0xf]
    %v142 = vld [vmem:[#allocation2 + $0xec] sm:$0xf]
    %v143 = vld [vmem:[#allocation2 + $0xf0] sm:$0xf]
    %v144 = vld [vmem:[#allocation2 + $0xf4] sm:$0xf]
    %v145 = vld [vmem:[#allocation2 + $0xf8] sm:$0xf]
    %v146 = vld [vmem:[#allocation2 + $0xfc] sm:$0xf]
    %v147 = vld [vmem:[#allocation2 + $0x100] sm:$0xf]
    %v148 = vld [vmem:[#allocation2 + $0x104] sm:$0xf]
    %v149 = vld [vmem:[#allocation2 + $0x108] sm:$0xf]
    %v150 = vld [vmem:[#allocation2 + $0x10c] sm:$0xf]
    %v151 = vld [vmem:[#allocation2 + $0x110] sm:$0xf]
    %v152 = vld [vmem:[#allocation2 + $0x114] sm:$0xf]
    %v153 = vld [vmem:[#allocation2 + $0x118] sm:$0xf]
    %v154 = vld [vmem:[#allocation2 + $0x11c] sm:$0xf]
    %v155 = vld [vmem:[#allocation2 + $0x120] sm:$0xf]
    %v156 = vld [vmem:[#allocation2 + $0x124] sm:$0xf]
    %v157 = vld [vmem:[#allocation2 + $0x128] sm:$0xf]
    %v158 = vld [vmem:[#allocation2 + $0x12c] sm:$0xf]
    %v159 = vld [vmem:[#allocation2 + $0x130] sm:$0xf]
    %v160 = vld [vmem:[#allocation2 + $0x134] sm:$0xf]
    %v161 = vld [vmem:[#allocation2 + $0x138] sm:$0xf]
    %v162 = vld [vmem:[#allocation2 + $0x13c] sm:$0xf]
    %v163 = vld [vmem:[#allocation2 + $0x140] sm:$0xf]
    %v164 = vld [vmem:[#allocation2 + $0x144] sm:$0xf]
    %v165 = vld [vmem:[#allocation2 + $0x148] sm:$0xf]
    %v166 = vld [vmem:[#allocation2 + $0x14c] sm:$0xf]
    %v167 = vld [vmem:[#allocation2 + $0x150] sm:$0xf]
    %v168 = vld [vmem:[#allocation2 + $0x154] sm:$0xf]
    %v169 = vld [vmem:[#allocation2 + $0x158] sm:$0xf]
    %v170 = vld [vmem:[#allocation2 + $0x15c] sm:$0xf]
    %v171 = vld [vmem:[#allocation2 + $0x160] sm:$0xf]
    %v172 = vld [vmem:[#allocation2 + $0x164] sm:$0xf]
    %v173 = vld [vmem:[#allocation2 + $0x168] sm:$0xf]
    %v174 = vld [vmem:[#allocation2 + $0x16c] sm:$0xf]
    %v175 = vld [vmem:[#allocation2 + $0x170] sm:$0xf]
    %v176 = vld [vmem:[#allocation2 + $0x174] sm:$0xf]
    %v177 = vld [vmem:[#allocation2 + $0x178] sm:$0xf]
    %v178 = vld [vmem:[#allocation2 + $0x17c] sm:$0xf]
    %v179 = vld [vmem:[#allocation2 + $0x180] sm:$0xf]
    %v180 = vld [vmem:[#allocation2 + $0x184] sm:$0xf]
    %v181 = vld [vmem:[#allocation2 + $0x188] sm:$0xf]
    %v182 = vld [vmem:[#allocation2 + $0x18c] sm:$0xf]
    %v183 = vld [vmem:[#allocation2 + $0x190] sm:$0xf]
    %v184 = vld [vmem:[#allocation2 + $0x194] sm:$0xf]
    %v185 = vld [vmem:[#allocation2 + $0x198] sm:$0xf]
    %v186 = vld [vmem:[#allocation2 + $0x19c] sm:$0xf]
    %v187 = vld [vmem:[#allocation2 + $0x1a0] sm:$0xf]
    %v188 = vld [vmem:[#allocation2 + $0x1a4] sm:$0xf]
    %v189 = vld [vmem:[#allocation2 + $0x1a8] sm:$0xf]
    %v190 = vld [vmem:[#allocation2 + $0x1ac] sm:$0xf]
    %v191 = vld [vmem:[#allocation2 + $0x1b0] sm:$0xf]
    %v192 = vld [vmem:[#allocation2 + $0x1b4] sm:$0xf]
    %v193 = vld [vmem:[#allocation2 + $0x1b8] sm:$0xf]
    %v194 = vld [vmem:[#allocation2 + $0x1bc] sm:$0xf]
    %v195 = vld [vmem:[#allocation2 + $0x1c0] sm:$0xf]
    %v196 = vld [vmem:[#allocation2 + $0x1c4] sm:$0xf]
    %v197 = vld [vmem:[#allocation2 + $0x1c8] sm:$0xf]
    %v198 = vld [vmem:[#allocation2 + $0x1cc] sm:$0xf]
    %v199 = vld [vmem:[#allocation2 + $0x1d0] sm:$0xf]
    %v200 = vld [vmem:[#allocation2 + $0x1d4] sm:$0xf]
    %v201 = vld [vmem:[#allocation2 + $0x1d8] sm:$0xf]
    %v202 = vld [vmem:[#allocation2 + $0x1dc] sm:$0xf]
    %v203 = vld [vmem:[#allocation2 + $0x1e0] sm:$0xf]
    %v204 = vld [vmem:[#allocation2 + $0x1e4] sm:$0xf]
    %v205 = vld [vmem:[#allocation2 + $0x1e8] sm:$0xf]
    %v206 = vld [vmem:[#allocation2 + $0x1ec] sm:$0xf]
    %v207 = vld [vmem:[#allocation2 + $0x1f0] sm:$0xf]
    %v208 = vld [vmem:[#allocation2 + $0x1f4] sm:$0xf]
    %v209 = vld [vmem:[#allocation2 + $0x1f8] sm:$0xf]
    %v210 = vld [vmem:[#allocation2 + $0x1fc] sm:$0xf]
    %v211 = vld [vmem:[%s2] sm:$0x1]
    %v213 = vperm.slane %v211, 0
    %v343 = vunpack.c.l.b16 %v83
    %v344 = vunpack.c.l.b16 %v84
    %v345 = vunpack.c.l.b16 %v85
    %v346 = vunpack.c.l.b16 %v86
    %v347 = vunpack.c.l.b16 %v87
    %v348 = vunpack.c.l.b16 %v88
    %v349 = vunpack.c.l.b16 %v89
    %v350 = vunpack.c.l.b16 %v90
    %v351 = vunpack.c.l.b16 %v91
    %v352 = vunpack.c.l.b16 %v92
    %v353 = vunpack.c.l.b16 %v93
    %v354 = vunpack.c.l.b16 %v94
    %v355 = vunpack.c.l.b16 %v95
    %v356 = vunpack.c.l.b16 %v96
    %v357 = vunpack.c.l.b16 %v97
    %v358 = vunpack.c.l.b16 %v98
    %v359 = vunpack.c.l.b16 %v99
    %v360 = vunpack.c.l.b16 %v100
    %v361 = vunpack.c.l.b16 %v101
    %v362 = vunpack.c.l.b16 %v102
    %v363 = vunpack.c.l.b16 %v103
    %v364 = vunpack.c.l.b16 %v104
    %v365 = vunpack.c.l.b16 %v105
    %v366 = vunpack.c.l.b16 %v106
    %v367 = vunpack.c.l.b16 %v107
    %v368 = vunpack.c.l.b16 %v108
    %v369 = vunpack.c.l.b16 %v109
    %v370 = vunpack.c.l.b16 %v110
    %v371 = vunpack.c.l.b16 %v111
    %v372 = vunpack.c.l.b16 %v112
    %v373 = vunpack.c.l.b16 %v113
    %v374 = vunpack.c.l.b16 %v114
    %v375 = vunpack.c.l.b16 %v115
    %v376 = vunpack.c.l.b16 %v116
    %v377 = vunpack.c.l.b16 %v117
    %v378 = vunpack.c.l.b16 %v118
    %v379 = vunpack.c.l.b16 %v119
    %v380 = vunpack.c.l.b16 %v120
    %v381 = vunpack.c.l.b16 %v121
    %v382 = vunpack.c.l.b16 %v122
    %v383 = vunpack.c.l.b16 %v123
    %v384 = vunpack.c.l.b16 %v124
    %v385 = vunpack.c.l.b16 %v125
    %v386 = vunpack.c.l.b16 %v126
    %v387 = vunpack.c.l.b16 %v127
    %v388 = vunpack.c.l.b16 %v128
    %v389 = vunpack.c.l.b16 %v129
    %v390 = vunpack.c.l.b16 %v130
    %v391 = vunpack.c.l.b16 %v131
    %v392 = vunpack.c.l.b16 %v132
    %v393 = vunpack.c.l.b16 %v133
    %v394 = vunpack.c.l.b16 %v134
    %v395 = vunpack.c.l.b16 %v135
    %v396 = vunpack.c.l.b16 %v136
    %v397 = vunpack.c.l.b16 %v137
    %v398 = vunpack.c.l.b16 %v138
    %v399 = vunpack.c.l.b16 %v139
    %v400 = vunpack.c.l.b16 %v140
    %v401 = vunpack.c.l.b16 %v141
    %v402 = vunpack.c.l.b16 %v142
    %v403 = vunpack.c.l.b16 %v143
    %v404 = vunpack.c.l.b16 %v144
    %v405 = vunpack.c.l.b16 %v145
    %v406 = vunpack.c.l.b16 %v146
    %v407 = vunpack.c.l.b16 %v147
    %v408 = vunpack.c.l.b16 %v148
    %v409 = vunpack.c.l.b16 %v149
    %v410 = vunpack.c.l.b16 %v150
    %v411 = vunpack.c.l.b16 %v151
    %v412 = vunpack.c.l.b16 %v152
    %v413 = vunpack.c.l.b16 %v153
    %v414 = vunpack.c.l.b16 %v154
    %v415 = vunpack.c.l.b16 %v155
    %v416 = vunpack.c.l.b16 %v156
    %v417 = vunpack.c.l.b16 %v157
    %v418 = vunpack.c.l.b16 %v158
    %v419 = vunpack.c.l.b16 %v159
    %v420 = vunpack.c.l.b16 %v160
    %v421 = vunpack.c.l.b16 %v161
    %v422 = vunpack.c.l.b16 %v162
    %v423 = vunpack.c.l.b16 %v163
    %v424 = vunpack.c.l.b16 %v164
    %v425 = vunpack.c.l.b16 %v165
    %v426 = vunpack.c.l.b16 %v166
    %v427 = vunpack.c.l.b16 %v167
    %v428 = vunpack.c.l.b16 %v168
    %v429 = vunpack.c.l.b16 %v169
    %v430 = vunpack.c.l.b16 %v170
    %v431 = vunpack.c.l.b16 %v171
    %v432 = vunpack.c.l.b16 %v172
    %v433 = vunpack.c.l.b16 %v173
    %v434 = vunpack.c.l.b16 %v174
    %v435 = vunpack.c.l.b16 %v175
    %v436 = vunpack.c.l.b16 %v176
    %v437 = vunpack.c.l.b16 %v177
    %v438 = vunpack.c.l.b16 %v178
    %v439 = vunpack.c.l.b16 %v179
    %v440 = vunpack.c.l.b16 %v180
    %v441 = vunpack.c.l.b16 %v181
    %v442 = vunpack.c.l.b16 %v182
    %v443 = vunpack.c.l.b16 %v183
    %v444 = vunpack.c.l.b16 %v184
    %v445 = vunpack.c.l.b16 %v185
    %v446 = vunpack.c.l.b16 %v186
    %v447 = vunpack.c.l.b16 %v187
    %v448 = vunpack.c.l.b16 %v188
    %v449 = vunpack.c.l.b16 %v189
    %v450 = vunpack.c.l.b16 %v190
    %v451 = vunpack.c.l.b16 %v191
    %v452 = vunpack.c.l.b16 %v192
    %v453 = vunpack.c.l.b16 %v193
    %v454 = vunpack.c.l.b16 %v194
    %v455 = vunpack.c.l.b16 %v195
    %v456 = vunpack.c.l.b16 %v196
    %v457 = vunpack.c.l.b16 %v197
    %v458 = vunpack.c.l.b16 %v198
    %v459 = vunpack.c.l.b16 %v199
    %v460 = vunpack.c.l.b16 %v200
    %v461 = vunpack.c.l.b16 %v201
    %v462 = vunpack.c.l.b16 %v202
    %v463 = vunpack.c.l.b16 %v203
    %v464 = vunpack.c.l.b16 %v204
    %v465 = vunpack.c.l.b16 %v205
    %v466 = vunpack.c.l.b16 %v206
    %v467 = vunpack.c.l.b16 %v207
    %v468 = vunpack.c.l.b16 %v208
    %v469 = vunpack.c.l.b16 %v209
    %v470 = vunpack.c.l.b16 %v210
    %v471 = vpack.c.b16 %v344, %v343
    %v472 = vpack.c.b16 %v346, %v345
    %v473 = vpack.c.b16 %v348, %v347
    %v474 = vpack.c.b16 %v350, %v349
    %v475 = vpack.c.b16 %v352, %v351
    %v476 = vpack.c.b16 %v354, %v353
    %v477 = vpack.c.b16 %v356, %v355
    %v478 = vpack.c.b16 %v358, %v357
    %v479 = vpack.c.b16 %v360, %v359
    %v480 = vpack.c.b16 %v362, %v361
    %v481 = vpack.c.b16 %v364, %v363
    %v482 = vpack.c.b16 %v366, %v365
    %v483 = vpack.c.b16 %v368, %v367
    %v484 = vpack.c.b16 %v370, %v369
    %v485 = vpack.c.b16 %v372, %v371
    %v486 = vpack.c.b16 %v374, %v373
    %v487 = vpack.c.b16 %v376, %v375
    %v488 = vpack.c.b16 %v378, %v377
    %v489 = vpack.c.b16 %v380, %v379
    %v490 = vpack.c.b16 %v382, %v381
    %v491 = vpack.c.b16 %v384, %v383
    %v492 = vpack.c.b16 %v386, %v385
    %v493 = vpack.c.b16 %v388, %v387
    %v494 = vpack.c.b16 %v390, %v389
    %v495 = vpack.c.b16 %v392, %v391
    %v496 = vpack.c.b16 %v394, %v393
    %v497 = vpack.c.b16 %v396, %v395
    %v498 = vpack.c.b16 %v398, %v397
    %v499 = vpack.c.b16 %v400, %v399
    %v500 = vpack.c.b16 %v402, %v401
    %v501 = vpack.c.b16 %v404, %v403
    %v502 = vpack.c.b16 %v406, %v405
    %v503 = vpack.c.b16 %v408, %v407
    %v504 = vpack.c.b16 %v410, %v409
    %v505 = vpack.c.b16 %v412, %v411
    %v506 = vpack.c.b16 %v414, %v413
    %v507 = vpack.c.b16 %v416, %v415
    %v508 = vpack.c.b16 %v418, %v417
    %v509 = vpack.c.b16 %v420, %v419
    %v510 = vpack.c.b16 %v422, %v421
    %v511 = vpack.c.b16 %v424, %v423
    %v512 = vpack.c.b16 %v426, %v425
    %v513 = vpack.c.b16 %v428, %v427
    %v514 = vpack.c.b16 %v430, %v429
    %v515 = vpack.c.b16 %v432, %v431
    %v516 = vpack.c.b16 %v434, %v433
    %v517 = vpack.c.b16 %v436, %v435
    %v518 = vpack.c.b16 %v438, %v437
    %v519 = vpack.c.b16 %v440, %v439
    %v520 = vpack.c.b16 %v442, %v441
    %v521 = vpack.c.b16 %v444, %v443
    %v522 = vpack.c.b16 %v446, %v445
    %v523 = vpack.c.b16 %v448, %v447
    %v524 = vpack.c.b16 %v450, %v449
    %v525 = vpack.c.b16 %v452, %v451
    %v526 = vpack.c.b16 %v454, %v453
    %v527 = vpack.c.b16 %v456, %v455
    %v528 = vpack.c.b16 %v458, %v457
    %v529 = vpack.c.b16 %v460, %v459
    %v530 = vpack.c.b16 %v462, %v461
    %v531 = vpack.c.b16 %v464, %v463
    %v532 = vpack.c.b16 %v466, %v465
    %v533 = vpack.c.b16 %v468, %v467
    %v534 = vpack.c.b16 %v470, %v469
    %599 = vmatpush.bf16.msra.mxu0 %v478
    %600 = vmatpush.bf16.msra.mxu0 %v477
    %601 = vmatpush.bf16.msra.mxu0 %v476
    %602 = vmatpush.bf16.msra.mxu0 %v475
    %603 = vmatpush.bf16.msra.mxu0 %v474
    %604 = vmatpush.bf16.msra.mxu0 %v473
    %605 = vmatpush.bf16.msra.mxu0 %v472
    %606 = vmatpush.bf16.msra.mxu0 %v471
    %607 = vmatmul.bf16.gmra.mxu0 %v75
    %v608 = vpop.f32.mrf.mxu0
    %v609 = vadd.f32 %v213, %v608
    %v610 = vpop.f32.mrf.mxu0
    %611 = vdwg.mxu0
    %612 = vmatpush.bf16.msra.mxu0 %v486
    %613 = vmatpush.bf16.msra.mxu0 %v485
    %614 = vmatpush.bf16.msra.mxu0 %v484
    %615 = vmatpush.bf16.msra.mxu0 %v483
    %616 = vmatpush.bf16.msra.mxu0 %v482
    %617 = vmatpush.bf16.msra.mxu0 %v481
    %618 = vmatpush.bf16.msra.mxu0 %v480
    %619 = vmatpush.bf16.msra.mxu0 %v479
    %620 = vmatmul.bf16.gmra.mxu0 %v76
    %v621 = vpop.f32.mrf.mxu0
    %v622 = vadd.f32 %v609, %v621
    %v623 = vpop.f32.mrf.mxu0
    %624 = vdwg.mxu0
    %625 = vmatpush.bf16.msra.mxu0 %v494
    %626 = vmatpush.bf16.msra.mxu0 %v493
    %627 = vmatpush.bf16.msra.mxu0 %v492
    %628 = vmatpush.bf16.msra.mxu0 %v491
    %629 = vmatpush.bf16.msra.mxu0 %v490
    %630 = vmatpush.bf16.msra.mxu0 %v489
    %631 = vmatpush.bf16.msra.mxu0 %v488
    %632 = vmatpush.bf16.msra.mxu0 %v487
    %633 = vmatmul.bf16.gmra.mxu0 %v77
    %v634 = vpop.f32.mrf.mxu0
    %v635 = vadd.f32 %v622, %v634
    %v636 = vpop.f32.mrf.mxu0
    %637 = vdwg.mxu0
    %638 = vmatpush.bf16.msra.mxu0 %v502
    %639 = vmatpush.bf16.msra.mxu0 %v501
    %640 = vmatpush.bf16.msra.mxu0 %v500
    %641 = vmatpush.bf16.msra.mxu0 %v499
    %642 = vmatpush.bf16.msra.mxu0 %v498
    %643 = vmatpush.bf16.msra.mxu0 %v497
    %644 = vmatpush.bf16.msra.mxu0 %v496
    %645 = vmatpush.bf16.msra.mxu0 %v495
    %646 = vmatmul.bf16.gmra.mxu0 %v78
    %v647 = vpop.f32.mrf.mxu0
    %v648 = vadd.f32 %v635, %v647
    %v649 = vpop.f32.mrf.mxu0
    %650 = vdwg.mxu0
    %651 = vmatpush.bf16.msra.mxu0 %v510
    %652 = vmatpush.bf16.msra.mxu0 %v509
    %653 = vmatpush.bf16.msra.mxu0 %v508
    %654 = vmatpush.bf16.msra.mxu0 %v507
    %655 = vmatpush.bf16.msra.mxu0 %v506
    %656 = vmatpush.bf16.msra.mxu0 %v505
    %657 = vmatpush.bf16.msra.mxu0 %v504
    %658 = vmatpush.bf16.msra.mxu0 %v503
    %659 = vmatmul.bf16.gmra.mxu0 %v79
    %v660 = vpop.f32.mrf.mxu0
    %v661 = vadd.f32 %v648, %v660
    %v662 = vpop.f32.mrf.mxu0
    %663 = vdwg.mxu0
    %664 = vmatpush.bf16.msra.mxu0 %v518
    %665 = vmatpush.bf16.msra.mxu0 %v517
    %666 = vmatpush.bf16.msra.mxu0 %v516
    %667 = vmatpush.bf16.msra.mxu0 %v515
    %668 = vmatpush.bf16.msra.mxu0 %v514
    %669 = vmatpush.bf16.msra.mxu0 %v513
    %670 = vmatpush.bf16.msra.mxu0 %v512
    %671 = vmatpush.bf16.msra.mxu0 %v511
    %672 = vmatmul.bf16.gmra.mxu0 %v80
    %v673 = vpop.f32.mrf.mxu0
    %v674 = vadd.f32 %v661, %v673
    %v675 = vpop.f32.mrf.mxu0
    %676 = vdwg.mxu0
    %677 = vmatpush.bf16.msra.mxu0 %v526
    %678 = vmatpush.bf16.msra.mxu0 %v525
    %679 = vmatpush.bf16.msra.mxu0 %v524
    %680 = vmatpush.bf16.msra.mxu0 %v523
    %681 = vmatpush.bf16.msra.mxu0 %v522
    %682 = vmatpush.bf16.msra.mxu0 %v521
    %683 = vmatpush.bf16.msra.mxu0 %v520
    %684 = vmatpush.bf16.msra.mxu0 %v519
    %685 = vmatmul.bf16.gmra.mxu0 %v81
    %v686 = vpop.f32.mrf.mxu0
    %v687 = vadd.f32 %v674, %v686
    %v688 = vpop.f32.mrf.mxu0
    %689 = vdwg.mxu0
    %690 = vmatpush.bf16.msra.mxu0 %v534
    %691 = vmatpush.bf16.msra.mxu0 %v533
    %692 = vmatpush.bf16.msra.mxu0 %v532
    %693 = vmatpush.bf16.msra.mxu0 %v531
    %694 = vmatpush.bf16.msra.mxu0 %v530
    %695 = vmatpush.bf16.msra.mxu0 %v529
    %696 = vmatpush.bf16.msra.mxu0 %v528
    %697 = vmatpush.bf16.msra.mxu0 %v527
    %698 = vmatmul.bf16.gmra.mxu0 %v82
    %v699 = vpop.f32.mrf.mxu0
    %v700 = vadd.f32 %v687, %v699
    %v701 = vpop.f32.mrf.mxu0
    %702 = vdwg.mxu0
    %v703 = vmax.f32 %v700, 0.0
    %v704 = vpack.c.bf16 %v703, %v703
    %v705 = vld [vmem:[#allocation4] sm:$0xff]
    %v706 = vld [vmem:[#allocation4 + $0x8] sm:$0xff]
    %v707 = vld [vmem:[#allocation4 + $0x10] sm:$0xff]
    %v708 = vld [vmem:[#allocation4 + $0x18] sm:$0xff]
    %v709 = vld [vmem:[#allocation4 + $0x20] sm:$0xff]
    %v710 = vld [vmem:[#allocation4 + $0x28] sm:$0xff]
    %v711 = vld [vmem:[#allocation4 + $0x30] sm:$0xff]
    %v712 = vld [vmem:[#allocation4 + $0x38] sm:$0xff]
    %v713 = vld [vmem:[#allocation4 + $0x40] sm:$0xff]
    %v714 = vld [vmem:[#allocation4 + $0x48] sm:$0xff]
    %v715 = vld [vmem:[#allocation4 + $0x50] sm:$0xff]
    %v716 = vld [vmem:[#allocation4 + $0x58] sm:$0xff]
    %v717 = vld [vmem:[#allocation4 + $0x60] sm:$0xff]
    %v718 = vld [vmem:[#allocation4 + $0x68] sm:$0xff]
    %v719 = vld [vmem:[#allocation4 + $0x70] sm:$0xff]
    %v720 = vld [vmem:[#allocation4 + $0x78] sm:$0xff]
    %v721 = vld [vmem:[#allocation4 + $0x80] sm:$0xff]
    %v722 = vld [vmem:[#allocation4 + $0x88] sm:$0xff]
    %v723 = vld [vmem:[#allocation4 + $0x90] sm:$0xff]
    %v724 = vld [vmem:[#allocation4 + $0x98] sm:$0xff]
    %v725 = vld [vmem:[#allocation4 + $0xa0] sm:$0xff]
    %v726 = vld [vmem:[#allocation4 + $0xa8] sm:$0xff]
    %v727 = vld [vmem:[#allocation4 + $0xb0] sm:$0xff]
    %v728 = vld [vmem:[#allocation4 + $0xb8] sm:$0xff]
    %v729 = vld [vmem:[#allocation4 + $0xc0] sm:$0xff]
    %v730 = vld [vmem:[#allocation4 + $0xc8] sm:$0xff]
    %v731 = vld [vmem:[#allocation4 + $0xd0] sm:$0xff]
    %v732 = vld [vmem:[#allocation4 + $0xd8] sm:$0xff]
    %v733 = vld [vmem:[#allocation4 + $0xe0] sm:$0xff]
    %v734 = vld [vmem:[#allocation4 + $0xe8] sm:$0xff]
    %v735 = vld [vmem:[#allocation4 + $0xf0] sm:$0xff]
    %v736 = vld [vmem:[#allocation4 + $0xf8] sm:$0xff]
    %v737 = vld [vmem:[#allocation4 + $0x100] sm:$0xff]
    %v738 = vld [vmem:[#allocation4 + $0x108] sm:$0xff]
    %v739 = vld [vmem:[#allocation4 + $0x110] sm:$0xff]
    %v740 = vld [vmem:[#allocation4 + $0x118] sm:$0xff]
    %v741 = vld [vmem:[#allocation4 + $0x120] sm:$0xff]
    %v742 = vld [vmem:[#allocation4 + $0x128] sm:$0xff]
    %v743 = vld [vmem:[#allocation4 + $0x130] sm:$0xff]
    %v744 = vld [vmem:[#allocation4 + $0x138] sm:$0xff]
    %v745 = vld [vmem:[#allocation4 + $0x140] sm:$0xff]
    %v746 = vld [vmem:[#allocation4 + $0x148] sm:$0xff]
    %v747 = vld [vmem:[#allocation4 + $0x150] sm:$0xff]
    %v748 = vld [vmem:[#allocation4 + $0x158] sm:$0xff]
    %v749 = vld [vmem:[#allocation4 + $0x160] sm:$0xff]
    %v750 = vld [vmem:[#allocation4 + $0x168] sm:$0xff]
    %v751 = vld [vmem:[#allocation4 + $0x170] sm:$0xff]
    %v752 = vld [vmem:[#allocation4 + $0x178] sm:$0xff]
    %v753 = vld [vmem:[#allocation4 + $0x180] sm:$0xff]
    %v754 = vld [vmem:[#allocation4 + $0x188] sm:$0xff]
    %v755 = vld [vmem:[#allocation4 + $0x190] sm:$0xff]
    %v756 = vld [vmem:[#allocation4 + $0x198] sm:$0xff]
    %v757 = vld [vmem:[#allocation4 + $0x1a0] sm:$0xff]
    %v758 = vld [vmem:[#allocation4 + $0x1a8] sm:$0xff]
    %v759 = vld [vmem:[#allocation4 + $0x1b0] sm:$0xff]
    %v760 = vld [vmem:[#allocation4 + $0x1b8] sm:$0xff]
    %v761 = vld [vmem:[#allocation4 + $0x1c0] sm:$0xff]
    %v762 = vld [vmem:[#allocation4 + $0x1c8] sm:$0xff]
    %v763 = vld [vmem:[#allocation4 + $0x1d0] sm:$0xff]
    %v764 = vld [vmem:[#allocation4 + $0x1d8] sm:$0xff]
    %v765 = vld [vmem:[#allocation4 + $0x1e0] sm:$0xff]
    %v766 = vld [vmem:[#allocation4 + $0x1e8] sm:$0xff]
    %v767 = vld [vmem:[#allocation4 + $0x1f0] sm:$0xff]
    %v768 = vld [vmem:[#allocation4 + $0x1f8] sm:$0xff]
    %v769 = vld [vmem:[%s4] sm:$0xff]
    %v771 = vperm.slane %v769, 0
    %v772 = vperm.slane %v769, 1
    %v773 = vperm.slane %v769, 2
    %v774 = vperm.slane %v769, 3
    %v775 = vperm.slane %v769, 4
    %v776 = vperm.slane %v769, 5
    %v777 = vperm.slane %v769, 6
    %v778 = vperm.slane %v769, 7
    %v851 = vunpack.c.l.b16 %v705
    %v852 = vunpack.c.h.b16 %v705
    %v853 = vunpack.c.l.b16 %v706
    %v854 = vunpack.c.h.b16 %v706
    %v855 = vunpack.c.l.b16 %v707
    %v856 = vunpack.c.h.b16 %v707
    %v857 = vunpack.c.l.b16 %v708
    %v858 = vunpack.c.h.b16 %v708
    %v859 = vunpack.c.l.b16 %v709
    %v860 = vunpack.c.h.b16 %v709
    %v861 = vunpack.c.l.b16 %v710
    %v862 = vunpack.c.h.b16 %v710
    %v863 = vunpack.c.l.b16 %v711
    %v864 = vunpack.c.h.b16 %v711
    %v865 = vunpack.c.l.b16 %v712
    %v866 = vunpack.c.h.b16 %v712
    %v867 = vunpack.c.l.b16 %v713
    %v868 = vunpack.c.h.b16 %v713
    %v869 = vunpack.c.l.b16 %v714
    %v870 = vunpack.c.h.b16 %v714
    %v871 = vunpack.c.l.b16 %v715
    %v872 = vunpack.c.h.b16 %v715
    %v873 = vunpack.c.l.b16 %v716
    %v874 = vunpack.c.h.b16 %v716
    %v875 = vunpack.c.l.b16 %v717
    %v876 = vunpack.c.h.b16 %v717
    %v877 = vunpack.c.l.b16 %v718
    %v878 = vunpack.c.h.b16 %v718
    %v879 = vunpack.c.l.b16 %v719
    %v880 = vunpack.c.h.b16 %v719
    %v881 = vunpack.c.l.b16 %v720
    %v882 = vunpack.c.h.b16 %v720
    %v883 = vunpack.c.l.b16 %v721
    %v884 = vunpack.c.h.b16 %v721
    %v885 = vunpack.c.l.b16 %v722
    %v886 = vunpack.c.h.b16 %v722
    %v887 = vunpack.c.l.b16 %v723
    %v888 = vunpack.c.h.b16 %v723
    %v889 = vunpack.c.l.b16 %v724
    %v890 = vunpack.c.h.b16 %v724
    %v891 = vunpack.c.l.b16 %v725
    %v892 = vunpack.c.h.b16 %v725
    %v893 = vunpack.c.l.b16 %v726
    %v894 = vunpack.c.h.b16 %v726
    %v895 = vunpack.c.l.b16 %v727
    %v896 = vunpack.c.h.b16 %v727
    %v897 = vunpack.c.l.b16 %v728
    %v898 = vunpack.c.h.b16 %v728
    %v899 = vunpack.c.l.b16 %v729
    %v900 = vunpack.c.h.b16 %v729
    %v901 = vunpack.c.l.b16 %v730
    %v902 = vunpack.c.h.b16 %v730
    %v903 = vunpack.c.l.b16 %v731
    %v904 = vunpack.c.h.b16 %v731
    %v905 = vunpack.c.l.b16 %v732
    %v906 = vunpack.c.h.b16 %v732
    %v907 = vunpack.c.l.b16 %v733
    %v908 = vunpack.c.h.b16 %v733
    %v909 = vunpack.c.l.b16 %v734
    %v910 = vunpack.c.h.b16 %v734
    %v911 = vunpack.c.l.b16 %v735
    %v912 = vunpack.c.h.b16 %v735
    %v913 = vunpack.c.l.b16 %v736
    %v914 = vunpack.c.h.b16 %v736
    %v915 = vunpack.c.l.b16 %v737
    %v916 = vunpack.c.h.b16 %v737
    %v917 = vunpack.c.l.b16 %v738
    %v918 = vunpack.c.h.b16 %v738
    %v919 = vunpack.c.l.b16 %v739
    %v920 = vunpack.c.h.b16 %v739
    %v921 = vunpack.c.l.b16 %v740
    %v922 = vunpack.c.h.b16 %v740
    %v923 = vunpack.c.l.b16 %v741
    %v924 = vunpack.c.h.b16 %v741
    %v925 = vunpack.c.l.b16 %v742
    %v926 = vunpack.c.h.b16 %v742
    %v927 = vunpack.c.l.b16 %v743
    %v928 = vunpack.c.h.b16 %v743
    %v929 = vunpack.c.l.b16 %v744
    %v930 = vunpack.c.h.b16 %v744
    %v931 = vunpack.c.l.b16 %v745
    %v932 = vunpack.c.h.b16 %v745
    %v933 = vunpack.c.l.b16 %v746
    %v934 = vunpack.c.h.b16 %v746
    %v935 = vunpack.c.l.b16 %v747
    %v936 = vunpack.c.h.b16 %v747
    %v937 = vunpack.c.l.b16 %v748
    %v938 = vunpack.c.h.b16 %v748
    %v939 = vunpack.c.l.b16 %v749
    %v940 = vunpack.c.h.b16 %v749
    %v941 = vunpack.c.l.b16 %v750
    %v942 = vunpack.c.h.b16 %v750
    %v943 = vunpack.c.l.b16 %v751
    %v944 = vunpack.c.h.b16 %v751
    %v945 = vunpack.c.l.b16 %v752
    %v946 = vunpack.c.h.b16 %v752
    %v947 = vunpack.c.l.b16 %v753
    %v948 = vunpack.c.h.b16 %v753
    %v949 = vunpack.c.l.b16 %v754
    %v950 = vunpack.c.h.b16 %v754
    %v951 = vunpack.c.l.b16 %v755
    %v952 = vunpack.c.h.b16 %v755
    %v953 = vunpack.c.l.b16 %v756
    %v954 = vunpack.c.h.b16 %v756
    %v955 = vunpack.c.l.b16 %v757
    %v956 = vunpack.c.h.b16 %v757
    %v957 = vunpack.c.l.b16 %v758
    %v958 = vunpack.c.h.b16 %v758
    %v959 = vunpack.c.l.b16 %v759
    %v960 = vunpack.c.h.b16 %v759
    %v961 = vunpack.c.l.b16 %v760
    %v962 = vunpack.c.h.b16 %v760
    %v963 = vunpack.c.l.b16 %v761
    %v964 = vunpack.c.h.b16 %v761
    %v965 = vunpack.c.l.b16 %v762
    %v966 = vunpack.c.h.b16 %v762
    %v967 = vunpack.c.l.b16 %v763
    %v968 = vunpack.c.h.b16 %v763
    %v969 = vunpack.c.l.b16 %v764
    %v970 = vunpack.c.h.b16 %v764
    %v971 = vunpack.c.l.b16 %v765
    %v972 = vunpack.c.h.b16 %v765
    %v973 = vunpack.c.l.b16 %v766
    %v974 = vunpack.c.h.b16 %v766
    %v975 = vunpack.c.l.b16 %v767
    %v976 = vunpack.c.h.b16 %v767
    %v977 = vunpack.c.l.b16 %v768
    %v978 = vunpack.c.h.b16 %v768
    %v979 = vpack.c.b16 %v859, %v851
    %v980 = vpack.c.b16 %v860, %v852
    %v981 = vpack.c.b16 %v861, %v853
    %v982 = vpack.c.b16 %v862, %v854
    %v983 = vpack.c.b16 %v863, %v855
    %v984 = vpack.c.b16 %v864, %v856
    %v985 = vpack.c.b16 %v865, %v857
    %v986 = vpack.c.b16 %v866, %v858
    %v987 = vpack.c.b16 %v875, %v867
    %v988 = vpack.c.b16 %v876, %v868
    %v989 = vpack.c.b16 %v877, %v869
    %v990 = vpack.c.b16 %v878, %v870
    %v991 = vpack.c.b16 %v879, %v871
    %v992 = vpack.c.b16 %v880, %v872
    %v993 = vpack.c.b16 %v881, %v873
    %v994 = vpack.c.b16 %v882, %v874
    %v995 = vpack.c.b16 %v891, %v883
    %v996 = vpack.c.b16 %v892, %v884
    %v997 = vpack.c.b16 %v893, %v885
    %v998 = vpack.c.b16 %v894, %v886
    %v999 = vpack.c.b16 %v895, %v887
    %v1000 = vpack.c.b16 %v896, %v888
    %v1001 = vpack.c.b16 %v897, %v889
    %v1002 = vpack.c.b16 %v898, %v890
    %v1003 = vpack.c.b16 %v907, %v899
    %v1004 = vpack.c.b16 %v908, %v900
    %v1005 = vpack.c.b16 %v909, %v901
    %v1006 = vpack.c.b16 %v910, %v902
    %v1007 = vpack.c.b16 %v911, %v903
    %v1008 = vpack.c.b16 %v912, %v904
    %v1009 = vpack.c.b16 %v913, %v905
    %v1010 = vpack.c.b16 %v914, %v906
    %v1011 = vpack.c.b16 %v923, %v915
    %v1012 = vpack.c.b16 %v924, %v916
    %v1013 = vpack.c.b16 %v925, %v917
    %v1014 = vpack.c.b16 %v926, %v918
    %v1015 = vpack.c.b16 %v927, %v919
    %v1016 = vpack.c.b16 %v928, %v920
    %v1017 = vpack.c.b16 %v929, %v921
    %v1018 = vpack.c.b16 %v930, %v922
    %v1019 = vpack.c.b16 %v939, %v931
    %v1020 = vpack.c.b16 %v940, %v932
    %v1021 = vpack.c.b16 %v941, %v933
    %v1022 = vpack.c.b16 %v942, %v934
    %v1023 = vpack.c.b16 %v943, %v935
    %v1024 = vpack.c.b16 %v944, %v936
    %v1025 = vpack.c.b16 %v945, %v937
    %v1026 = vpack.c.b16 %v946, %v938
    %v1027 = vpack.c.b16 %v955, %v947
    %v1028 = vpack.c.b16 %v956, %v948
    %v1029 = vpack.c.b16 %v957, %v949
    %v1030 = vpack.c.b16 %v958, %v950
    %v1031 = vpack.c.b16 %v959, %v951
    %v1032 = vpack.c.b16 %v960, %v952
    %v1033 = vpack.c.b16 %v961, %v953
    %v1034 = vpack.c.b16 %v962, %v954
    %v1035 = vpack.c.b16 %v971, %v963
    %v1036 = vpack.c.b16 %v972, %v964
    %v1037 = vpack.c.b16 %v973, %v965
    %v1038 = vpack.c.b16 %v974, %v966
    %v1039 = vpack.c.b16 %v975, %v967
    %v1040 = vpack.c.b16 %v976, %v968
    %v1041 = vpack.c.b16 %v977, %v969
    %v1042 = vpack.c.b16 %v978, %v970
    %1107 = vmatpush.bf16.msra.mxu0 %v1035
    %1108 = vmatpush.bf16.msra.mxu0 %v1027
    %1109 = vmatpush.bf16.msra.mxu0 %v1019
    %1110 = vmatpush.bf16.msra.mxu0 %v1011
    %1111 = vmatpush.bf16.msra.mxu0 %v1003
    %1112 = vmatpush.bf16.msra.mxu0 %v995
    %1113 = vmatpush.bf16.msra.mxu0 %v987
    %1114 = vmatpush.bf16.msra.mxu0 %v979
    %1115 = vmatmul.bf16.gmra.mxu0 %v704
    %v1116 = vpop.f32.mrf.mxu0
    %v1117 = vadd.f32 %v771, %v1116
    %v1118 = vpop.f32.mrf.mxu0
    %1119 = vdwg.mxu0
    %1120 = vmatpush.bf16.msra.mxu0 %v1036
    %1121 = vmatpush.bf16.msra.mxu0 %v1028
    %1122 = vmatpush.bf16.msra.mxu0 %v1020
    %1123 = vmatpush.bf16.msra.mxu0 %v1012
    %1124 = vmatpush.bf16.msra.mxu0 %v1004
    %1125 = vmatpush.bf16.msra.mxu0 %v996
    %1126 = vmatpush.bf16.msra.mxu0 %v988
    %1127 = vmatpush.bf16.msra.mxu0 %v980
    %1128 = vmatmul.bf16.gmra.mxu0 %v704
    %v1129 = vpop.f32.mrf.mxu0
    %v1130 = vadd.f32 %v772, %v1129
    %v1131 = vpop.f32.mrf.mxu0
    %1132 = vdwg.mxu0
    %1133 = vmatpush.bf16.msra.mxu0 %v1037
    %1134 = vmatpush.bf16.msra.mxu0 %v1029
    %1135 = vmatpush.bf16.msra.mxu0 %v1021
    %1136 = vmatpush.bf16.msra.mxu0 %v1013
    %1137 = vmatpush.bf16.msra.mxu0 %v1005
    %1138 = vmatpush.bf16.msra.mxu0 %v997
    %1139 = vmatpush.bf16.msra.mxu0 %v989
    %1140 = vmatpush.bf16.msra.mxu0 %v981
    %1141 = vmatmul.bf16.gmra.mxu0 %v704
    %v1142 = vpop.f32.mrf.mxu0
    %v1143 = vadd.f32 %v773, %v1142
    %v1144 = vpop.f32.mrf.mxu0
    %1145 = vdwg.mxu0
    %1146 = vmatpush.bf16.msra.mxu0 %v1038
    %1147 = vmatpush.bf16.msra.mxu0 %v1030
    %1148 = vmatpush.bf16.msra.mxu0 %v1022
    %1149 = vmatpush.bf16.msra.mxu0 %v1014
    %1150 = vmatpush.bf16.msra.mxu0 %v1006
    %1151 = vmatpush.bf16.msra.mxu0 %v998
    %1152 = vmatpush.bf16.msra.mxu0 %v990
    %1153 = vmatpush.bf16.msra.mxu0 %v982
    %1154 = vmatmul.bf16.gmra.mxu0 %v704
    %v1155 = vpop.f32.mrf.mxu0
    %v1156 = vadd.f32 %v774, %v1155
    %v1157 = vpop.f32.mrf.mxu0
    %1158 = vdwg.mxu0
    %1159 = vmatpush.bf16.msra.mxu0 %v1039
    %1160 = vmatpush.bf16.msra.mxu0 %v1031
    %1161 = vmatpush.bf16.msra.mxu0 %v1023
    %1162 = vmatpush.bf16.msra.mxu0 %v1015
    %1163 = vmatpush.bf16.msra.mxu0 %v1007
    %1164 = vmatpush.bf16.msra.mxu0 %v999
    %1165 = vmatpush.bf16.msra.mxu0 %v991
    %1166 = vmatpush.bf16.msra.mxu0 %v983
    %1167 = vmatmul.bf16.gmra.mxu0 %v704
    %v1168 = vpop.f32.mrf.mxu0
    %v1169 = vadd.f32 %v775, %v1168
    %v1170 = vpop.f32.mrf.mxu0
    %1171 = vdwg.mxu0
    %1172 = vmatpush.bf16.msra.mxu0 %v1040
    %1173 = vmatpush.bf16.msra.mxu0 %v1032
    %1174 = vmatpush.bf16.msra.mxu0 %v1024
    %1175 = vmatpush.bf16.msra.mxu0 %v1016
    %1176 = vmatpush.bf16.msra.mxu0 %v1008
    %1177 = vmatpush.bf16.msra.mxu0 %v1000
    %1178 = vmatpush.bf16.msra.mxu0 %v992
    %1179 = vmatpush.bf16.msra.mxu0 %v984
    %1180 = vmatmul.bf16.gmra.mxu0 %v704
    %v1181 = vpop.f32.mrf.mxu0
    %v1182 = vadd.f32 %v776, %v1181
    %v1183 = vpop.f32.mrf.mxu0
    %1184 = vdwg.mxu0
    %1185 = vmatpush.bf16.msra.mxu0 %v1041
    %1186 = vmatpush.bf16.msra.mxu0 %v1033
    %1187 = vmatpush.bf16.msra.mxu0 %v1025
    %1188 = vmatpush.bf16.msra.mxu0 %v1017
    %1189 = vmatpush.bf16.msra.mxu0 %v1009
    %1190 = vmatpush.bf16.msra.mxu0 %v1001
    %1191 = vmatpush.bf16.msra.mxu0 %v993
    %1192 = vmatpush.bf16.msra.mxu0 %v985
    %1193 = vmatmul.bf16.gmra.mxu0 %v704
    %v1194 = vpop.f32.mrf.mxu0
    %v1195 = vadd.f32 %v777, %v1194
    %v1196 = vpop.f32.mrf.mxu0
    %1197 = vdwg.mxu0
    %1198 = vmatpush.bf16.msra.mxu0 %v1042
    %1199 = vmatpush.bf16.msra.mxu0 %v1034
    %1200 = vmatpush.bf16.msra.mxu0 %v1026
    %1201 = vmatpush.bf16.msra.mxu0 %v1018
    %1202 = vmatpush.bf16.msra.mxu0 %v1010
    %1203 = vmatpush.bf16.msra.mxu0 %v1002
    %1204 = vmatpush.bf16.msra.mxu0 %v994
    %1205 = vmatpush.bf16.msra.mxu0 %v986
    %1206 = vmatmul.bf16.gmra.mxu0 %v704
    %v1207 = vpop.f32.mrf.mxu0
    %v1208 = vadd.f32 %v778, %v1207
    %v1209 = vpop.f32.mrf.mxu0
    %1210 = vdwg.mxu0
    %v1211 = vtanh.pop %v1117
    %v1212 = vtanh.pop %v1130
    %v1213 = vtanh.pop %v1143
    %v1214 = vtanh.pop %v1156
    %v1215 = vtanh.pop %v1169
    %v1216 = vtanh.pop %v1182
    %v1217 = vtanh.pop %v1195
    %v1218 = vtanh.pop %v1208
    %v1227 = vrot.slane %v1212, 6
    %v1228 = vrot.slane %v1213, 4
    %v1229 = vrot.slane %v1214, 2
    %v1230 = vrot.slane %v1216, 6
    %v1231 = vrot.slane %v1217, 4
    %v1232 = vrot.slane %v1218, 2
    %vm1233 = vcmask 1041408
    %v1234 = vsel %vm1233, %v1211, %v1227
    %vm1235 = vcmask 1045508
    %v1236 = vsel %vm1235, %v1228, %v1229
    %vm1237 = vcmask 1043456
    %v1238 = vsel %vm1237, %v1234, %v1236
    %v1239 = vsel %vm1233, %v1215, %v1230
    %v1240 = vsel %vm1235, %v1231, %v1232
    %v1241 = vsel %vm1237, %v1239, %v1240
    %1244 = vst [vmem:[%s5] sm:$0xff] %v1238
    %1245 = vst [vmem:[%s5 + $0x8] sm:$0xff] %v1241
    // Predicated region
    $region30: #{simple_mlp_reshape.1} parent=1 // pred_check
      _
    $region31: #{simple_mlp_reshape.1} parent=1 // pred_check_branch
      %1247 = sbr.rel (0) target = $region33
    $region32: #{simple_mlp_reshape.1} parent=1 // pred_region
      _
    $region33: #{simple_mlp_reshape.1} parent=1 // pred_fallthru
      _
    // Predicated region
    $region34: #{simple_mlp_reshape.1} parent=1 // pred_check
      _
    $region35: #{simple_mlp_reshape.1} parent=1 // pred_check_branch
      %1249 = sbr.rel (0) target = $region37
    $region36: #{simple_mlp_reshape.1} parent=1 // pred_region
      _
    $region37: #{simple_mlp_reshape.1} parent=1 // pred_fallthru
      _
    %1250 = vsyncpa [#allocation3], 1
    %1251 = vsyncpa [#allocation5], 1

</llo_original>
